<compile_context>
chip_gen: v5e
topology: v5e:2x2
jax: 0.10.0
libtpu: 0.0.40
codegen_flags: <defaults>
</compile_context>

<pallas_src>
import jax
import jax.numpy as jnp
import numpy as np
from jax.experimental import pallas as pl
from jax.experimental.pallas import tpu as pltpu

N_FEATURE = 32
N_OUTPUT = 4
BATCH = 8
EPS = 1e-5
HIDDEN = (256, 128, 32, 10)
LANE = 128

# Padded layer widths (every narrow dim padded to a full 128-lane vreg):
#   L1: 32->256, L2: 256->128, L3: 128->128 (32 real), L4: 128->128 (10 real),
#   out: 128->128 (4 real)
PAD_DIMS = (N_FEATURE, 256, 128, 128, 128, 128)
_W_SLAB_ROWS = 256 + 128 + 128 + 128          # w2..w5 stacked along rows -> (640, 128)


def mlp_kernel(x_ref, w1_ref, ws_ref, b_ref, out_ref):
    """Fused eval-mode MLP. BN pre-folded into bf16 weights / f32 biases; dropout is
    identity; narrow dims padded to 128 lanes so every store is lane-dense.
    x_ref is already bf16 (host-cast), so there is no in-kernel activation cast."""
    f32 = jnp.float32
    h = x_ref[...]                                               # (tb, 32) bf16

    # layer 1: (tb, 32) @ (32, 256)
    z = jnp.dot(h, w1_ref[...], preferred_element_type=f32) + b_ref[0:1, :]
    h = jnp.maximum(z, 0.0).astype(jnp.bfloat16)

    # layer 2: rows [0, 256) of the slab
    z = jnp.dot(h, ws_ref[0:256, :], preferred_element_type=f32) + b_ref[1:2, 0:LANE]
    h = jnp.maximum(z, 0.0).astype(jnp.bfloat16)

    # layer 3: rows [256, 384)
    z = jnp.dot(h, ws_ref[256:384, :], preferred_element_type=f32) + b_ref[2:3, 0:LANE]
    h = jnp.maximum(z, 0.0).astype(jnp.bfloat16)

    # layer 4: rows [384, 512)
    z = jnp.dot(h, ws_ref[384:512, :], preferred_element_type=f32) + b_ref[3:4, 0:LANE]
    h = jnp.maximum(z, 0.0).astype(jnp.bfloat16)

    # output layer: rows [512, 640), no ReLU
    y = jnp.dot(h, ws_ref[512:640, :], preferred_element_type=f32) + b_ref[4:5, 0:LANE]
    out_ref[...] = y.astype(out_ref.dtype)


# ----------------------------------- wrappers ---------------------------------------

def _round_up(v, m):
    return ((v + m - 1) // m) * m


def choose_tb(batch, cap=256):
    """Batch tile: multiple of 16 (bf16 sublane tile), <= cap, and split into >= 2
    grid steps whenever the batch allows it so the "parallel" axis spans both v7x
    TensorCores.  Sweep cap per generation: ~128 on v5e (vst/vreg pressure),
    256-512 on v6e/v7x (fewer serial grid steps)."""
    if batch <= 16:
        return 16
    half = _round_up((batch + 1) // 2, 16)
    return max(16, min(cap, half))


def net_forward_fused(x_bf16, kernel_params, tb):
    """Hot path: ONE pallas_call.  x_bf16: (Bp, N_FEATURE) bf16 with Bp % tb == 0.
    Returns the padded (Bp, 128) f32 buffer; only [:B, :N_OUTPUT] is meaningful
    (padded rows contain bias-propagated garbage)."""
    w1, w_slab, b_slab = kernel_params
    Bp = x_bf16.shape[0]
    num_tiles = Bp // tb

    flops = 2 * Bp * sum(PAD_DIMS[i] * PAD_DIMS[i + 1] for i in range(5))
    bytes_accessed = (x_bf16.size * 2 + w1.size * 2 + w_slab.size * 2
                      + b_slab.size * 4 + Bp * LANE * 4)

    const2d = lambda i: (0, 0)
    if num_tiles > 1:
        # Params are grid-invariant; single-buffer them when the grid really loops.
        param_spec = lambda shape: pl.BlockSpec(shape, const2d,
                                                pipeline_mode=pl.Buffered(1))
    else:
        param_spec = lambda shape: pl.BlockSpec(shape, const2d)

    return pl.pallas_call(
        mlp_kernel,
        out_shape=jax.ShapeDtypeStruct((Bp, LANE), jnp.float32),
        grid=(num_tiles,),
        in_specs=[
            pl.BlockSpec((tb, N_FEATURE), lambda i: (i, 0)),
            param_spec(w1.shape),
            param_spec(w_slab.shape),
            param_spec(b_slab.shape),
        ],
        out_specs=pl.BlockSpec((tb, LANE), lambda i: (i, 0)),
        compiler_params=pltpu.CompilerParams(
            dimension_semantics=("parallel",),      # shards batch tiles across TCs (v7x)
            vmem_limit_bytes=8 * 1024 * 1024),      # real working set ~0.5 MiB
        cost_estimate=pl.CostEstimate(flops=flops, transcendentals=0,
                                      bytes_accessed=bytes_accessed),
    )(x_bf16, w1, w_slab, b_slab)


def net_forward(x, kernel_params, tb_cap=256):
    """Convenience wrapper: bf16-cast + pad the batch, run the fused kernel, slice to
    (B, N_OUTPUT).  Latency-critical callers should do the cast/pad once outside the
    hot loop and consume the padded (Bp, 128) buffer of net_forward_fused directly
    (the slice here is a separate XLA op / HBM round-trip)."""
    B = x.shape[0]
    tb = choose_tb(B, tb_cap)
    Bp = _round_up(B, tb)
    xb = x.astype(jnp.bfloat16)
    if Bp != B:                                     # resolved at trace time
        xb = jnp.pad(xb, ((0, Bp - B), (0, 0)))
    y = net_forward_fused(xb, kernel_params, tb)
    return y[:B, :N_OUTPUT]


# ----------------------------- host-side parameter prep -----------------------------

def init_raw_params(key):
    """PyTorch-default Linear init (+-1/sqrt(fan_in)) + random BN running stats."""
    dims = (N_FEATURE,) + HIDDEN + (N_OUTPUT,)
    keys = jax.random.split(key, 40)
    ki = 0
    layers = []
    for li in range(5):
        fan_in, fan_out = dims[li], dims[li + 1]
        bound = 1.0 / np.sqrt(fan_in)
        w = jax.random.uniform(keys[ki], (fan_in, fan_out), jnp.float32, -bound, bound); ki += 1
        b = jax.random.uniform(keys[ki], (fan_out,), jnp.float32, -bound, bound); ki += 1
        if li < 4:   # BatchNorm1d after the first four linears
            gamma = 1.0 + 0.1 * jax.random.normal(keys[ki], (fan_out,), jnp.float32); ki += 1
            beta = 0.1 * jax.random.normal(keys[ki], (fan_out,), jnp.float32); ki += 1
            mean = 0.1 * jax.random.normal(keys[ki], (fan_out,), jnp.float32); ki += 1
            var = jax.random.uniform(keys[ki], (fan_out,), jnp.float32, 0.5, 1.5); ki += 1
        else:
            gamma = beta = mean = var = None
        layers.append((w, b, gamma, beta, mean, var))
    return layers


def fold_and_pad(layers):
    """Fold eval-mode BN into (w, b) and zero-pad narrow dims up to PAD_DIMS (f32)."""
    folded = []
    for li, (w, b, g, beta, mu, var) in enumerate(layers):
        if g is not None:
            scale = g / jnp.sqrt(var + EPS)          # per-output-feature
            w = w * scale[None, :]
            b = b * scale + (beta - mu * scale)
        rows, cols = PAD_DIMS[li], PAD_DIMS[li + 1]
        w = jnp.pad(w, ((0, rows - w.shape[0]), (0, cols - w.shape[1])))
        b = jnp.pad(b, ((0, cols - b.shape[0]),))
        folded.append((w.astype(jnp.float32), b.astype(jnp.float32)))
    return folded


def pack_kernel_params(folded):
    """Pack into: w1 (32,256) bf16, weight slab (640,128) bf16, bias slab (8,256) f32."""
    (w1, b1), (w2, b2), (w3, b3), (w4, b4), (w5, b5) = folded
    w_slab = jnp.concatenate([w2, w3, w4, w5], axis=0).astype(jnp.bfloat16)
    assert w_slab.shape == (_W_SLAB_ROWS, LANE)
    b_slab = jnp.zeros((8, PAD_DIMS[1]), jnp.float32)
    b_slab = b_slab.at[0, :].set(b1)
    for r, b in enumerate((b2, b3, b4, b5), start=1):
        b_slab = b_slab.at[r, :LANE].set(b)
    return w1.astype(jnp.bfloat16), w_slab, b_slab


# ----------------------------------- references -------------------------------------

def reference_unfolded(x, layers):
    """Exact PyTorch eval-mode semantics, f32, highest matmul precision."""
    h = x
    for (w, b, g, beta, mu, var) in layers:
        h = jnp.dot(h, w, precision="highest") + b
        if g is not None:
            h = (h - mu) / jnp.sqrt(var + EPS) * g + beta   # BN (running stats)
            h = jnp.maximum(h, 0.0)                         # dropout=id, then ReLU
    return h


def reference_folded(x, folded):
    """Folded + padded params, f32 math (validates folding/padding)."""
    h = x
    for li, (w, b) in enumerate(folded):
        h = jnp.dot(h, w, precision="highest") + b
        if li < 4:
            h = jnp.maximum(h, 0.0)
    return h[:, :N_OUTPUT]


def reference_kernel_math(x, w1, w_slab, b_slab):
    """Pure-JAX emulation of the kernel's bf16-operand / f32-accumulate math."""
    f32 = jnp.float32
    h = x.astype(jnp.bfloat16)
    z = jnp.dot(h, w1, preferred_element_type=f32) + b_slab[0:1, :]
    h = jnp.maximum(z, 0.0).astype(jnp.bfloat16)
    bounds = ((0, 256), (256, 384), (384, 512), (512, 640))
    for r, (lo, hi) in enumerate(bounds, start=1):
        z = jnp.dot(h, w_slab[lo:hi, :], preferred_element_type=f32) + b_slab[r:r + 1, :LANE]
        h = jnp.maximum(z, 0.0).astype(jnp.bfloat16) if r < 4 else z
    return h[:, :N_OUTPUT]


if __name__ == "__main__":
    key = jax.random.PRNGKey(0)
    kx, kp = jax.random.split(key)
    x = jax.random.normal(kx, (BATCH, N_FEATURE), jnp.float32)

    layers = init_raw_params(kp)
    folded = fold_and_pad(layers)
    kernel_params = pack_kernel_params(folded)

    # Host-side check: BN folding + zero padding preserves the f32 forward exactly.
    y_unfolded = reference_unfolded(x, layers)
    y_folded = reference_folded(x, folded)
    assert jnp.allclose(y_folded, y_unfolded, atol=1e-4, rtol=1e-4), "fold/pad mismatch"

    # Run the fused Pallas kernel (jit the whole wrapper -> single XLA program).
    fwd = jax.jit(net_forward)
    y = jax.block_until_ready(fwd(x, kernel_params))
    assert y.shape == (BATCH, N_OUTPUT)

    # Kernel vs. identical bf16/f32 math done outside the kernel.
    y_ref = reference_kernel_math(x, *kernel_params)
    assert jnp.allclose(y, y_ref, atol=1e-3, rtol=1e-3), "kernel mismatch vs reference"
    print("KERNEL_OK")
</pallas_src>

<mosaic_0001>
module attributes {stable_mosaic.version = 11 : i64} {
  func.func @mlp_kernel(%arg0: i32, %arg1: memref<16x32xbf16, #tpu.memory_space<vmem>>, %arg2: memref<32x256xbf16, #tpu.memory_space<vmem>>, %arg3: memref<640x128xbf16, #tpu.memory_space<vmem>>, %arg4: memref<8x256xf32, #tpu.memory_space<vmem>>, %arg5: memref<16x128xf32, #tpu.memory_space<vmem>>) attributes {dimension_semantics = [#tpu.dimension_semantics<parallel>], iteration_bounds = array<i64: 1>, scalar_prefetch = 0 : i64, scratch_operands = 0 : i64, tpu.core_type = #tpu.core_type<tc>, window_params = [{transform_indices = @transform_0, window_bounds = array<i64: 16, 32>}, {pipeline_mode = #tpu.pipeline_mode<synchronous>, transform_indices = @transform_1, window_bounds = array<i64: 32, 256>}, {pipeline_mode = #tpu.pipeline_mode<synchronous>, transform_indices = @transform_2, window_bounds = array<i64: 640, 128>}, {pipeline_mode = #tpu.pipeline_mode<synchronous>, transform_indices = @transform_3, window_bounds = array<i64: 8, 256>}, {transform_indices = @transform_4, window_bounds = array<i64: 16, 128>}]} {
    %c0 = arith.constant 0 : index
    %c0_0 = arith.constant 0 : index
    %0 = vector.load %arg1[%c0, %c0_0] : memref<16x32xbf16, #tpu.memory_space<vmem>>, vector<16x32xbf16>
    %c0_1 = arith.constant 0 : index
    %c0_2 = arith.constant 0 : index
    %1 = vector.load %arg2[%c0_1, %c0_2] : memref<32x256xbf16, #tpu.memory_space<vmem>>, vector<32x256xbf16>
    %cst = arith.constant dense<0.000000e+00> : vector<16x256xf32>
    %2 = tpu.matmul %0, %1, %cst {dimension_numbers = #tpu.dot_dimension_numbers<[1], [0], [0], [1], [0, 0, 1, 1], [], []>} : vector<16x32xbf16>, vector<32x256xbf16>, vector<16x256xf32> -> vector<16x256xf32>
    %c0_3 = arith.constant 0 : index
    %c0_4 = arith.constant 0 : index
    %3 = vector.load %arg4[%c0_3, %c0_4] : memref<8x256xf32, #tpu.memory_space<vmem>>, vector<1x256xf32>
    %4 = vector.broadcast %3 : vector<1x256xf32> to vector<16x256xf32>
    %5 = arith.addf %2, %4 : vector<16x256xf32>
    %cst_5 = arith.constant 0.000000e+00 : f32
    %6 = vector.broadcast %cst_5 : f32 to vector<16x256xf32>
    %7 = arith.maximumf %5, %6 : vector<16x256xf32>
    %8 = arith.truncf %7 : vector<16x256xf32> to vector<16x256xbf16>
    %c0_6 = arith.constant 0 : index
    %c0_7 = arith.constant 0 : index
    %9 = vector.load %arg3[%c0_6, %c0_7] : memref<640x128xbf16, #tpu.memory_space<vmem>>, vector<256x128xbf16>
    %cst_8 = arith.constant dense<0.000000e+00> : vector<16x128xf32>
    %10 = tpu.matmul %8, %9, %cst_8 {dimension_numbers = #tpu.dot_dimension_numbers<[1], [0], [0], [1], [0, 0, 1, 1], [], []>} : vector<16x256xbf16>, vector<256x128xbf16>, vector<16x128xf32> -> vector<16x128xf32>
    %c1 = arith.constant 1 : index
    %c0_9 = arith.constant 0 : index
    %11 = vector.load %arg4[%c1, %c0_9] : memref<8x256xf32, #tpu.memory_space<vmem>>, vector<1x128xf32>
    %12 = vector.broadcast %11 : vector<1x128xf32> to vector<16x128xf32>
    %13 = arith.addf %10, %12 : vector<16x128xf32>
    %cst_10 = arith.constant 0.000000e+00 : f32
    %14 = vector.broadcast %cst_10 : f32 to vector<16x128xf32>
    %15 = arith.maximumf %13, %14 : vector<16x128xf32>
    %16 = arith.truncf %15 : vector<16x128xf32> to vector<16x128xbf16>
    %c256 = arith.constant 256 : index
    %c0_11 = arith.constant 0 : index
    %17 = vector.load %arg3[%c256, %c0_11] : memref<640x128xbf16, #tpu.memory_space<vmem>>, vector<128x128xbf16>
    %cst_12 = arith.constant dense<0.000000e+00> : vector<16x128xf32>
    %18 = tpu.matmul %16, %17, %cst_12 {dimension_numbers = #tpu.dot_dimension_numbers<[1], [0], [0], [1], [0, 0, 1, 1], [], []>} : vector<16x128xbf16>, vector<128x128xbf16>, vector<16x128xf32> -> vector<16x128xf32>
    %c2 = arith.constant 2 : index
    %c0_13 = arith.constant 0 : index
    %19 = vector.load %arg4[%c2, %c0_13] : memref<8x256xf32, #tpu.memory_space<vmem>>, vector<1x128xf32>
    %20 = vector.broadcast %19 : vector<1x128xf32> to vector<16x128xf32>
    %21 = arith.addf %18, %20 : vector<16x128xf32>
    %cst_14 = arith.constant 0.000000e+00 : f32
    %22 = vector.broadcast %cst_14 : f32 to vector<16x128xf32>
    %23 = arith.maximumf %21, %22 : vector<16x128xf32>
    %24 = arith.truncf %23 : vector<16x128xf32> to vector<16x128xbf16>
    %c384 = arith.constant 384 : index
    %c0_15 = arith.constant 0 : index
    %25 = vector.load %arg3[%c384, %c0_15] : memref<640x128xbf16, #tpu.memory_space<vmem>>, vector<128x128xbf16>
    %cst_16 = arith.constant dense<0.000000e+00> : vector<16x128xf32>
    %26 = tpu.matmul %24, %25, %cst_16 {dimension_numbers = #tpu.dot_dimension_numbers<[1], [0], [0], [1], [0, 0, 1, 1], [], []>} : vector<16x128xbf16>, vector<128x128xbf16>, vector<16x128xf32> -> vector<16x128xf32>
    %c3 = arith.constant 3 : index
    %c0_17 = arith.constant 0 : index
    %27 = vector.load %arg4[%c3, %c0_17] : memref<8x256xf32, #tpu.memory_space<vmem>>, vector<1x128xf32>
    %28 = vector.broadcast %27 : vector<1x128xf32> to vector<16x128xf32>
    %29 = arith.addf %26, %28 : vector<16x128xf32>
    %cst_18 = arith.constant 0.000000e+00 : f32
    %30 = vector.broadcast %cst_18 : f32 to vector<16x128xf32>
    %31 = arith.maximumf %29, %30 : vector<16x128xf32>
    %32 = arith.truncf %31 : vector<16x128xf32> to vector<16x128xbf16>
    %c512 = arith.constant 512 : index
    %c0_19 = arith.constant 0 : index
    %33 = vector.load %arg3[%c512, %c0_19] : memref<640x128xbf16, #tpu.memory_space<vmem>>, vector<128x128xbf16>
    %cst_20 = arith.constant dense<0.000000e+00> : vector<16x128xf32>
    %34 = tpu.matmul %32, %33, %cst_20 {dimension_numbers = #tpu.dot_dimension_numbers<[1], [0], [0], [1], [0, 0, 1, 1], [], []>} : vector<16x128xbf16>, vector<128x128xbf16>, vector<16x128xf32> -> vector<16x128xf32>
    %c4 = arith.constant 4 : index
    %c0_21 = arith.constant 0 : index
    %35 = vector.load %arg4[%c4, %c0_21] : memref<8x256xf32, #tpu.memory_space<vmem>>, vector<1x128xf32>
    %36 = vector.broadcast %35 : vector<1x128xf32> to vector<16x128xf32>
    %37 = arith.addf %34, %36 : vector<16x128xf32>
    %c0_22 = arith.constant 0 : index
    %c0_23 = arith.constant 0 : index
    %38 = vector.load %arg5[%c0_22, %c0_23] : memref<16x128xf32, #tpu.memory_space<vmem>>, vector<16x128xf32>
    tpu.vector_store %arg5[%c0_22, %c0_23], %37 {strides = array<i32>} : memref<16x128xf32, #tpu.memory_space<vmem>>, vector<16x128xf32>,
    return
  }
  func.func @transform_0(%arg0: i32) -> (i32, i32) {
    %c0_i32 = arith.constant 0 : i32
    %c0_i32_0 = arith.constant 0 : i32
    return %arg0, %c0_i32 : i32, i32
  }
  func.func @transform_1(%arg0: i32) -> (i32, i32) {
    %c0_i32 = arith.constant 0 : i32
    %c0_i32_0 = arith.constant 0 : i32
    %c0_i32_1 = arith.constant 0 : i32
    return %c0_i32, %c0_i32_0 : i32, i32
  }
  func.func @transform_2(%arg0: i32) -> (i32, i32) {
    %c0_i32 = arith.constant 0 : i32
    %c0_i32_0 = arith.constant 0 : i32
    %c0_i32_1 = arith.constant 0 : i32
    return %c0_i32, %c0_i32_0 : i32, i32
  }
  func.func @transform_3(%arg0: i32) -> (i32, i32) {
    %c0_i32 = arith.constant 0 : i32
    %c0_i32_0 = arith.constant 0 : i32
    %c0_i32_1 = arith.constant 0 : i32
    return %c0_i32, %c0_i32_0 : i32, i32
  }
  func.func @transform_4(%arg0: i32) -> (i32, i32) {
    %c0_i32 = arith.constant 0 : i32
    %c0_i32_0 = arith.constant 0 : i32
    return %arg0, %c0_i32 : i32, i32
  }
}

</mosaic_0001>

<llo_original>
// kernel: net_forward.1
$region0: #{net_forward.1}
  #allocation0 [shape = 'u32[]', space=smem, size = 0x4, offset = 0x4, fixed_abs, tag = 'smem constant byte address 0x4 - core index']
  #allocation1 [shape = 'u32[72,128]{1,0:T(1,128)}', space=vmem, size = 0x9000, scoped, tag = 'internal scratch']
  %s0 = inlined_call_operand.vmem [shape: bf16[16,32], index: 0, kind: input, shape index: {}]
  %s1 = inlined_call_operand.hbm [shape: bf16[32,256], index: 1, kind: input, shape index: {}]
  %s2 = inlined_call_operand.hbm [shape: bf16[640,128], index: 2, kind: input, shape index: {}]
  %s3 = inlined_call_operand.vmem [shape: f32[8,256], index: 3, kind: input, shape index: {}]
  %s4 = inlined_call_operand.vmem [shape: f32[16,128], index: 4, kind: output, shape index: {}]
  %s5 = sld [smem:[#allocation0]]
  $region34: #{net_forward.1} parent=0
    _
  %s7 = ssub.s32 1, %s5
  %s8 = scalar_select 0, %s7, %s5
  $region1: #{net_forward.1} parent=0
    #allocation2 [shape = 'u8[16384]{0}', space=vmem, size = 0x4000, scoped, tag = 'input window, operand 1, single buffered']
    #allocation3 [shape = 's32[1]{0}', space=sflag, size = 0x4, scoped, tag = 'scoped memory for net_forward.1']
    #allocation4 [shape = 'u8[163840]{0}', space=vmem, size = 0x28000, scoped, tag = 'input window, operand 2, single buffered']
    #allocation5 [shape = 's32[1]{0}', space=sflag, size = 0x4, scoped, tag = 'scoped memory for net_forward.1']
    %9 = vsyncpa [#allocation3], 0
    %10 = vsyncpa [#allocation5], 0
    // Predicated region
    $region2: #{net_forward.1} parent=1 // pred_check
      _
    $region3: #{net_forward.1} parent=1 // pred_check_branch
      %12 = sbr.rel (0) target = $region5
    $region4: #{net_forward.1} parent=1 // pred_region
      _
    $region5: #{net_forward.1} parent=1 // pred_fallthru
      _
    // Predicated region
    $region6: #{net_forward.1} parent=1 // pred_check
      _
    $region7: #{net_forward.1} parent=1 // pred_check_branch
      %14 = sbr.rel (0) target = $region9
    $region8: #{net_forward.1} parent=1 // pred_region
      %16 = vsyncadd [#allocation3], 0
      %s17 = sshll.u32 %s1, 4
      %s18 = int_to_ptr.hbm [resolvable:$true] %s17
      %s19 = sshll.u32 [#allocation2], 4
      %s20 = int_to_ptr.vmem [resolvable:$true] %s19
      %25 = dma.hbm_to_vmem [thread:$0]  %s18, 512, %s20, [#allocation3], 128, 128, 8
    $region9: #{net_forward.1} parent=1 // pred_fallthru
      _
    // Predicated region
    $region10: #{net_forward.1} parent=1 // pred_check
      _
    $region11: #{net_forward.1} parent=1 // pred_check_branch
      %27 = sbr.rel (0) target = $region13
    $region12: #{net_forward.1} parent=1 // pred_region
      %29 = vsyncadd [#allocation5], 0
      %s30 = sshll.u32 %s2, 4
      %s31 = int_to_ptr.hbm [resolvable:$true] %s30
      %s32 = sshll.u32 [#allocation4], 4
      %s33 = int_to_ptr.vmem [resolvable:$true] %s32
      %38 = dma.hbm_to_vmem [thread:$0]  %s31, 5120, %s33, [#allocation5], 64, 64, 4
    $region13: #{net_forward.1} parent=1 // pred_fallthru
      _
    // Predicated region
    $region14: #{net_forward.1} parent=1 // pred_check
      _
    $region15: #{net_forward.1} parent=1 // pred_check_branch
      %40 = sbr.rel (0) target = $region17
    $region16: #{net_forward.1} parent=1 // pred_region
      _
    $region17: #{net_forward.1} parent=1 // pred_fallthru
      _
    // Predicated region
    $region18: #{net_forward.1} parent=1 // pred_check
      _
    $region19: #{net_forward.1} parent=1 // pred_check_branch
      %42 = sbr.rel (0) target = $region21
    $region20: #{net_forward.1} parent=1 // pred_region
      %44 = dma.done [#allocation3], 512
    $region21: #{net_forward.1} parent=1 // pred_fallthru
      _
    // Predicated region
    $region22: #{net_forward.1} parent=1 // pred_check
      _
    $region23: #{net_forward.1} parent=1 // pred_check_branch
      %46 = sbr.rel (0) target = $region25
    $region24: #{net_forward.1} parent=1 // pred_region
      %48 = dma.done [#allocation5], 5120
    $region25: #{net_forward.1} parent=1 // pred_fallthru
      _
    %v50 = vld [vmem:[%s0] sm:$0xf]
    %v51 = vld [vmem:[%s0 + $0x4] sm:$0xf]
    %v52 = vld [vmem:[#allocation2] sm:$0xff]
    %v53 = vld [vmem:[#allocation2 + $0x8] sm:$0xff]
    %v54 = vld [vmem:[#allocation2 + $0x10] sm:$0xff]
    %v55 = vld [vmem:[#allocation2 + $0x18] sm:$0xff]
    %v56 = vld [vmem:[%s3] ss:$8 sm:$0x3]
    %v58 = vperm.slane %v56, 0
    %v59 = vperm.slane %v56, 1
    %v64 = vunpack.c.l.b16 %v50
    %v65 = vunpack.c.l.b16 %v51
    %v66 = vpack.c.b16 %v65, %v64
    %v71 = vunpack.c.l.b16 %v52
    %v72 = vunpack.c.h.b16 %v52
    %v73 = vunpack.c.l.b16 %v53
    %v74 = vunpack.c.h.b16 %v53
    %v75 = vunpack.c.l.b16 %v54
    %v76 = vunpack.c.h.b16 %v54
    %v77 = vunpack.c.l.b16 %v55
    %v78 = vunpack.c.h.b16 %v55
    %v79 = vpack.c.b16 %v73, %v71
    %v80 = vpack.c.b16 %v74, %v72
    %v81 = vpack.c.b16 %v77, %v75
    %v82 = vpack.c.b16 %v78, %v76
    %vm87 = vcmask 261120
    %v89 = vsel %vm87, %v66, 0
    %91 = vmatpush.bf16.msra.mxu0 0
    %92 = vmatpush.bf16.msra.mxu0 0
    %93 = vmatpush.bf16.msra.mxu0 0
    %94 = vmatpush.bf16.msra.mxu0 0
    %95 = vmatpush.bf16.msra.mxu0 0
    %96 = vmatpush.bf16.msra.mxu0 0
    %97 = vmatpush.bf16.msra.mxu0 %v81
    %98 = vmatpush.bf16.msra.mxu0 %v79
    %99 = vmatmul.bf16.gmra.mxu0 %v89
    %v100 = vpop.f32.mrf.mxu0
    %v101 = vadd.f32 %v58, %v100
    %v102 = vpop.f32.mrf.mxu0
    %v103 = vadd.f32 %v58, %v102
    %104 = vdwg.mxu0
    %105 = vmatpush.bf16.msra.mxu0 0
    %106 = vmatpush.bf16.msra.mxu0 0
    %107 = vmatpush.bf16.msra.mxu0 0
    %108 = vmatpush.bf16.msra.mxu0 0
    %109 = vmatpush.bf16.msra.mxu0 0
    %110 = vmatpush.bf16.msra.mxu0 0
    %111 = vmatpush.bf16.msra.mxu0 %v82
    %112 = vmatpush.bf16.msra.mxu0 %v80
    %113 = vmatmul.bf16.gmra.mxu0 %v89
    %v114 = vpop.f32.mrf.mxu0
    %v115 = vadd.f32 %v59, %v114
    %v116 = vpop.f32.mrf.mxu0
    %v117 = vadd.f32 %v59, %v116
    %118 = vdwg.mxu0
    %v119 = vmax.f32 %v101, 0.0
    %v120 = vmax.f32 %v115, 0.0
    %v121 = vmax.f32 %v103, 0.0
    %v122 = vmax.f32 %v117, 0.0
    %v123 = vpack.c.bf16 %v121, %v119
    %v124 = vpack.c.bf16 %v122, %v120
    %v125 = vld [vmem:[#allocation4] sm:$0xf]
    %v126 = vld [vmem:[#allocation4 + $0x4] sm:$0xf]
    %v127 = vld [vmem:[#allocation4 + $0x8] sm:$0xf]
    %v128 = vld [vmem:[#allocation4 + $0xc] sm:$0xf]
    %v129 = vld [vmem:[#allocation4 + $0x10] sm:$0xf]
    %v130 = vld [vmem:[#allocation4 + $0x14] sm:$0xf]
    %v131 = vld [vmem:[#allocation4 + $0x18] sm:$0xf]
    %v132 = vld [vmem:[#allocation4 + $0x1c] sm:$0xf]
    %v133 = vld [vmem:[#allocation4 + $0x20] sm:$0xf]
    %v134 = vld [vmem:[#allocation4 + $0x24] sm:$0xf]
    %v135 = vld [vmem:[#allocation4 + $0x28] sm:$0xf]
    %v136 = vld [vmem:[#allocation4 + $0x2c] sm:$0xf]
    %v137 = vld [vmem:[#allocation4 + $0x30] sm:$0xf]
    %v138 = vld [vmem:[#allocation4 + $0x34] sm:$0xf]
    %v139 = vld [vmem:[#allocation4 + $0x38] sm:$0xf]
    %v140 = vld [vmem:[#allocation4 + $0x3c] sm:$0xf]
    %v141 = vld [vmem:[#allocation4 + $0x40] sm:$0xf]
    %v142 = vld [vmem:[#allocation4 + $0x44] sm:$0xf]
    %v143 = vld [vmem:[#allocation4 + $0x48] sm:$0xf]
    %v144 = vld [vmem:[#allocation4 + $0x4c] sm:$0xf]
    %v145 = vld [vmem:[#allocation4 + $0x50] sm:$0xf]
    %v146 = vld [vmem:[#allocation4 + $0x54] sm:$0xf]
    %v147 = vld [vmem:[#allocation4 + $0x58] sm:$0xf]
    %v148 = vld [vmem:[#allocation4 + $0x5c] sm:$0xf]
    %v149 = vld [vmem:[#allocation4 + $0x60] sm:$0xf]
    %v150 = vld [vmem:[#allocation4 + $0x64] sm:$0xf]
    %v151 = vld [vmem:[#allocation4 + $0x68] sm:$0xf]
    %v152 = vld [vmem:[#allocation4 + $0x6c] sm:$0xf]
    %v153 = vld [vmem:[#allocation4 + $0x70] sm:$0xf]
    %v154 = vld [vmem:[#allocation4 + $0x74] sm:$0xf]
    %v155 = vld [vmem:[#allocation4 + $0x78] sm:$0xf]
    %v156 = vld [vmem:[#allocation4 + $0x7c] sm:$0xf]
    %v157 = vld [vmem:[%s3 + $0x1] ss:$0 sm:$0xff]
    %v190 = vunpack.c.l.b16 %v125
    %v191 = vunpack.c.l.b16 %v126
    %v192 = vunpack.c.l.b16 %v127
    %v193 = vunpack.c.l.b16 %v128
    %v194 = vunpack.c.l.b16 %v129
    %v195 = vunpack.c.l.b16 %v130
    %v196 = vunpack.c.l.b16 %v131
    %v197 = vunpack.c.l.b16 %v132
    %v198 = vunpack.c.l.b16 %v133
    %v199 = vunpack.c.l.b16 %v134
    %v200 = vunpack.c.l.b16 %v135
    %v201 = vunpack.c.l.b16 %v136
    %v202 = vunpack.c.l.b16 %v137
    %v203 = vunpack.c.l.b16 %v138
    %v204 = vunpack.c.l.b16 %v139
    %v205 = vunpack.c.l.b16 %v140
    %v206 = vunpack.c.l.b16 %v141
    %v207 = vunpack.c.l.b16 %v142
    %v208 = vunpack.c.l.b16 %v143
    %v209 = vunpack.c.l.b16 %v144
    %v210 = vunpack.c.l.b16 %v145
    %v211 = vunpack.c.l.b16 %v146
    %v212 = vunpack.c.l.b16 %v147
    %v213 = vunpack.c.l.b16 %v148
    %v214 = vunpack.c.l.b16 %v149
    %v215 = vunpack.c.l.b16 %v150
    %v216 = vunpack.c.l.b16 %v151
    %v217 = vunpack.c.l.b16 %v152
    %v218 = vunpack.c.l.b16 %v153
    %v219 = vunpack.c.l.b16 %v154
    %v220 = vunpack.c.l.b16 %v155
    %v221 = vunpack.c.l.b16 %v156
    %v222 = vpack.c.b16 %v191, %v190
    %v223 = vpack.c.b16 %v193, %v192
    %v224 = vpack.c.b16 %v195, %v194
    %v225 = vpack.c.b16 %v197, %v196
    %v226 = vpack.c.b16 %v199, %v198
    %v227 = vpack.c.b16 %v201, %v200
    %v228 = vpack.c.b16 %v203, %v202
    %v229 = vpack.c.b16 %v205, %v204
    %v230 = vpack.c.b16 %v207, %v206
    %v231 = vpack.c.b16 %v209, %v208
    %v232 = vpack.c.b16 %v211, %v210
    %v233 = vpack.c.b16 %v213, %v212
    %v234 = vpack.c.b16 %v215, %v214
    %v235 = vpack.c.b16 %v217, %v216
    %v236 = vpack.c.b16 %v219, %v218
    %v237 = vpack.c.b16 %v221, %v220
    %254 = vmatpush.bf16.msra.mxu0 %v229
    %255 = vmatpush.bf16.msra.mxu0 %v228
    %256 = vmatpush.bf16.msra.mxu0 %v227
    %257 = vmatpush.bf16.msra.mxu0 %v226
    %258 = vmatpush.bf16.msra.mxu0 %v225
    %259 = vmatpush.bf16.msra.mxu0 %v224
    %260 = vmatpush.bf16.msra.mxu0 %v223
    %261 = vmatpush.bf16.msra.mxu0 %v222
    %262 = vmatmul.bf16.gmra.mxu0 %v123
    %v263 = vpop.f32.mrf.mxu0
    %v264 = vadd.f32 %v157, %v263
    %v265 = vpop.f32.mrf.mxu0
    %v266 = vadd.f32 %v157, %v265
    %267 = vdwg.mxu0
    %268 = vmatpush.bf16.msra.mxu0 %v237
    %269 = vmatpush.bf16.msra.mxu0 %v236
    %270 = vmatpush.bf16.msra.mxu0 %v235
    %271 = vmatpush.bf16.msra.mxu0 %v234
    %272 = vmatpush.bf16.msra.mxu0 %v233
    %273 = vmatpush.bf16.msra.mxu0 %v232
    %274 = vmatpush.bf16.msra.mxu0 %v231
    %275 = vmatpush.bf16.msra.mxu0 %v230
    %276 = vmatmul.bf16.gmra.mxu0 %v124
    %v277 = vpop.f32.mrf.mxu0
    %v278 = vadd.f32 %v264, %v277
    %v279 = vpop.f32.mrf.mxu0
    %v280 = vadd.f32 %v266, %v279
    %281 = vdwg.mxu0
    %v282 = vmax.f32 %v278, 0.0
    %v283 = vmax.f32 %v280, 0.0
    %v284 = vpack.c.bf16 %v283, %v282
    %v285 = vld [vmem:[#allocation4 + $0x80] sm:$0xf]
    %v286 = vld [vmem:[#allocation4 + $0x84] sm:$0xf]
    %v287 = vld [vmem:[#allocation4 + $0x88] sm:$0xf]
    %v288 = vld [vmem:[#allocation4 + $0x8c] sm:$0xf]
    %v289 = vld [vmem:[#allocation4 + $0x90] sm:$0xf]
    %v290 = vld [vmem:[#allocation4 + $0x94] sm:$0xf]
    %v291 = vld [vmem:[#allocation4 + $0x98] sm:$0xf]
    %v292 = vld [vmem:[#allocation4 + $0x9c] sm:$0xf]
    %v293 = vld [vmem:[#allocation4 + $0xa0] sm:$0xf]
    %v294 = vld [vmem:[#allocation4 + $0xa4] sm:$0xf]
    %v295 = vld [vmem:[#allocation4 + $0xa8] sm:$0xf]
    %v296 = vld [vmem:[#allocation4 + $0xac] sm:$0xf]
    %v297 = vld [vmem:[#allocation4 + $0xb0] sm:$0xf]
    %v298 = vld [vmem:[#allocation4 + $0xb4] sm:$0xf]
    %v299 = vld [vmem:[#allocation4 + $0xb8] sm:$0xf]
    %v300 = vld [vmem:[#allocation4 + $0xbc] sm:$0xf]
    %v301 = vld [vmem:[%s3 + $0x2] ss:$0 sm:$0xff]
    %v318 = vunpack.c.l.b16 %v285
    %v319 = vunpack.c.l.b16 %v286
    %v320 = vunpack.c.l.b16 %v287
    %v321 = vunpack.c.l.b16 %v288
    %v322 = vunpack.c.l.b16 %v289
    %v323 = vunpack.c.l.b16 %v290
    %v324 = vunpack.c.l.b16 %v291
    %v325 = vunpack.c.l.b16 %v292
    %v326 = vunpack.c.l.b16 %v293
    %v327 = vunpack.c.l.b16 %v294
    %v328 = vunpack.c.l.b16 %v295
    %v329 = vunpack.c.l.b16 %v296
    %v330 = vunpack.c.l.b16 %v297
    %v331 = vunpack.c.l.b16 %v298
    %v332 = vunpack.c.l.b16 %v299
    %v333 = vunpack.c.l.b16 %v300
    %v334 = vpack.c.b16 %v319, %v318
    %v335 = vpack.c.b16 %v321, %v320
    %v336 = vpack.c.b16 %v323, %v322
    %v337 = vpack.c.b16 %v325, %v324
    %v338 = vpack.c.b16 %v327, %v326
    %v339 = vpack.c.b16 %v329, %v328
    %v340 = vpack.c.b16 %v331, %v330
    %v341 = vpack.c.b16 %v333, %v332
    %350 = vmatpush.bf16.msra.mxu0 %v341
    %351 = vmatpush.bf16.msra.mxu0 %v340
    %352 = vmatpush.bf16.msra.mxu0 %v339
    %353 = vmatpush.bf16.msra.mxu0 %v338
    %354 = vmatpush.bf16.msra.mxu0 %v337
    %355 = vmatpush.bf16.msra.mxu0 %v336
    %356 = vmatpush.bf16.msra.mxu0 %v335
    %357 = vmatpush.bf16.msra.mxu0 %v334
    %358 = vmatmul.bf16.gmra.mxu0 %v284
    %v359 = vpop.f32.mrf.mxu0
    %v360 = vadd.f32 %v301, %v359
    %v361 = vpop.f32.mrf.mxu0
    %v362 = vadd.f32 %v301, %v361
    %363 = vdwg.mxu0
    %v364 = vmax.f32 %v360, 0.0
    %v365 = vmax.f32 %v362, 0.0
    %v366 = vpack.c.bf16 %v365, %v364
    %v367 = vld [vmem:[#allocation4 + $0xc0] sm:$0xf]
    %v368 = vld [vmem:[#allocation4 + $0xc4] sm:$0xf]
    %v369 = vld [vmem:[#allocation4 + $0xc8] sm:$0xf]
    %v370 = vld [vmem:[#allocation4 + $0xcc] sm:$0xf]
    %v371 = vld [vmem:[#allocation4 + $0xd0] sm:$0xf]
    %v372 = vld [vmem:[#allocation4 + $0xd4] sm:$0xf]
    %v373 = vld [vmem:[#allocation4 + $0xd8] sm:$0xf]
    %v374 = vld [vmem:[#allocation4 + $0xdc] sm:$0xf]
    %v375 = vld [vmem:[#allocation4 + $0xe0] sm:$0xf]
    %v376 = vld [vmem:[#allocation4 + $0xe4] sm:$0xf]
    %v377 = vld [vmem:[#allocation4 + $0xe8] sm:$0xf]
    %v378 = vld [vmem:[#allocation4 + $0xec] sm:$0xf]
    %v379 = vld [vmem:[#allocation4 + $0xf0] sm:$0xf]
    %v380 = vld [vmem:[#allocation4 + $0xf4] sm:$0xf]
    %v381 = vld [vmem:[#allocation4 + $0xf8] sm:$0xf]
    %v382 = vld [vmem:[#allocation4 + $0xfc] sm:$0xf]
    %v383 = vld [vmem:[%s3 + $0x3] ss:$0 sm:$0xff]
    %v400 = vunpack.c.l.b16 %v367
    %v401 = vunpack.c.l.b16 %v368
    %v402 = vunpack.c.l.b16 %v369
    %v403 = vunpack.c.l.b16 %v370
    %v404 = vunpack.c.l.b16 %v371
    %v405 = vunpack.c.l.b16 %v372
    %v406 = vunpack.c.l.b16 %v373
    %v407 = vunpack.c.l.b16 %v374
    %v408 = vunpack.c.l.b16 %v375
    %v409 = vunpack.c.l.b16 %v376
    %v410 = vunpack.c.l.b16 %v377
    %v411 = vunpack.c.l.b16 %v378
    %v412 = vunpack.c.l.b16 %v379
    %v413 = vunpack.c.l.b16 %v380
    %v414 = vunpack.c.l.b16 %v381
    %v415 = vunpack.c.l.b16 %v382
    %v416 = vpack.c.b16 %v401, %v400
    %v417 = vpack.c.b16 %v403, %v402
    %v418 = vpack.c.b16 %v405, %v404
    %v419 = vpack.c.b16 %v407, %v406
    %v420 = vpack.c.b16 %v409, %v408
    %v421 = vpack.c.b16 %v411, %v410
    %v422 = vpack.c.b16 %v413, %v412
    %v423 = vpack.c.b16 %v415, %v414
    %432 = vmatpush.bf16.msra.mxu0 %v423
    %433 = vmatpush.bf16.msra.mxu0 %v422
    %434 = vmatpush.bf16.msra.mxu0 %v421
    %435 = vmatpush.bf16.msra.mxu0 %v420
    %436 = vmatpush.bf16.msra.mxu0 %v419
    %437 = vmatpush.bf16.msra.mxu0 %v418
    %438 = vmatpush.bf16.msra.mxu0 %v417
    %439 = vmatpush.bf16.msra.mxu0 %v416
    %440 = vmatmul.bf16.gmra.mxu0 %v366
    %v441 = vpop.f32.mrf.mxu0
    %v442 = vadd.f32 %v383, %v441
    %v443 = vpop.f32.mrf.mxu0
    %v444 = vadd.f32 %v383, %v443
    %445 = vdwg.mxu0
    %v446 = vmax.f32 %v442, 0.0
    %v447 = vmax.f32 %v444, 0.0
    %v448 = vpack.c.bf16 %v447, %v446
    %v449 = vld [vmem:[#allocation4 + $0x100] sm:$0xf]
    %v450 = vld [vmem:[#allocation4 + $0x104] sm:$0xf]
    %v451 = vld [vmem:[#allocation4 + $0x108] sm:$0xf]
    %v452 = vld [vmem:[#allocation4 + $0x10c] sm:$0xf]
    %v453 = vld [vmem:[#allocation4 + $0x110] sm:$0xf]
    %v454 = vld [vmem:[#allocation4 + $0x114] sm:$0xf]
    %v455 = vld [vmem:[#allocation4 + $0x118] sm:$0xf]
    %v456 = vld [vmem:[#allocation4 + $0x11c] sm:$0xf]
    %v457 = vld [vmem:[#allocation4 + $0x120] sm:$0xf]
    %v458 = vld [vmem:[#allocation4 + $0x124] sm:$0xf]
    %v459 = vld [vmem:[#allocation4 + $0x128] sm:$0xf]
    %v460 = vld [vmem:[#allocation4 + $0x12c] sm:$0xf]
    %v461 = vld [vmem:[#allocation4 + $0x130] sm:$0xf]
    %v462 = vld [vmem:[#allocation4 + $0x134] sm:$0xf]
    %v463 = vld [vmem:[#allocation4 + $0x138] sm:$0xf]
    %v464 = vld [vmem:[#allocation4 + $0x13c] sm:$0xf]
    %v465 = vld [vmem:[%s3 + $0x4] ss:$0 sm:$0xff]
    %v482 = vunpack.c.l.b16 %v449
    %v483 = vunpack.c.l.b16 %v450
    %v484 = vunpack.c.l.b16 %v451
    %v485 = vunpack.c.l.b16 %v452
    %v486 = vunpack.c.l.b16 %v453
    %v487 = vunpack.c.l.b16 %v454
    %v488 = vunpack.c.l.b16 %v455
    %v489 = vunpack.c.l.b16 %v456
    %v490 = vunpack.c.l.b16 %v457
    %v491 = vunpack.c.l.b16 %v458
    %v492 = vunpack.c.l.b16 %v459
    %v493 = vunpack.c.l.b16 %v460
    %v494 = vunpack.c.l.b16 %v461
    %v495 = vunpack.c.l.b16 %v462
    %v496 = vunpack.c.l.b16 %v463
    %v497 = vunpack.c.l.b16 %v464
    %v498 = vpack.c.b16 %v483, %v482
    %v499 = vpack.c.b16 %v485, %v484
    %v500 = vpack.c.b16 %v487, %v486
    %v501 = vpack.c.b16 %v489, %v488
    %v502 = vpack.c.b16 %v491, %v490
    %v503 = vpack.c.b16 %v493, %v492
    %v504 = vpack.c.b16 %v495, %v494
    %v505 = vpack.c.b16 %v497, %v496
    %514 = vmatpush.bf16.msra.mxu0 %v505
    %515 = vmatpush.bf16.msra.mxu0 %v504
    %516 = vmatpush.bf16.msra.mxu0 %v503
    %517 = vmatpush.bf16.msra.mxu0 %v502
    %518 = vmatpush.bf16.msra.mxu0 %v501
    %519 = vmatpush.bf16.msra.mxu0 %v500
    %520 = vmatpush.bf16.msra.mxu0 %v499
    %521 = vmatpush.bf16.msra.mxu0 %v498
    %522 = vmatmul.bf16.gmra.mxu0 %v448
    %v523 = vpop.f32.mrf.mxu0
    %v524 = vadd.f32 %v465, %v523
    %v525 = vpop.f32.mrf.mxu0
    %v526 = vadd.f32 %v465, %v525
    %527 = vdwg.mxu0
    %528 = vst [vmem:[%s4] sm:$0xff] %v524
    %529 = vst [vmem:[%s4 + $0x8] sm:$0xff] %v526
    // Predicated region
    $region26: #{net_forward.1} parent=1 // pred_check
      _
    $region27: #{net_forward.1} parent=1 // pred_check_branch
      %531 = sbr.rel (0) target = $region29
    $region28: #{net_forward.1} parent=1 // pred_region
      _
    $region29: #{net_forward.1} parent=1 // pred_fallthru
      _
    // Predicated region
    $region30: #{net_forward.1} parent=1 // pred_check
      _
    $region31: #{net_forward.1} parent=1 // pred_check_branch
      %533 = sbr.rel (0) target = $region33
    $region32: #{net_forward.1} parent=1 // pred_region
      _
    $region33: #{net_forward.1} parent=1 // pred_fallthru
      _
    %534 = vsyncpa [#allocation3], 1
    %535 = vsyncpa [#allocation5], 1

</llo_original>
